<compile_context>
chip_gen: v7x
topology: tpu7x:2x2x1
jax: 0.10.0
libtpu: 0.0.40
codegen_flags: <defaults>
</compile_context>

<pallas_src>
import functools
import math

import jax
import jax.numpy as jnp
from jax import lax
from jax.experimental import pallas as pl
from jax.experimental.pallas import tpu as pltpu


def _round_down(x, m):
    return (int(x) // m) * m


def _vmem_capacity_bytes():
    # Generation-aware VMEM query (v7x: 64 MiB per TensorCore, v5e/v6e: 128 MiB).
    try:
        return int(pltpu.get_tpu_info().vmem_capacity_bytes)
    except Exception:
        return 64 << 20  # conservative fallback: assume the smallest generation


# ----------------------------------------------------------------------------------
# Path A: N-blocked, single-shot LSE (small feature maps).
# ----------------------------------------------------------------------------------
def _lse_nblock_kernel(x_ref, w_ref, out_ref, *, precision):
    # x_ref: (tile_n, C, HW)   w_ref: (K, C)   out_ref: (tile_n, K)
    tn = x_ref.shape[0]
    # Broadcast W once per kernel body (tiny) so the contraction is a standard
    # both-sided batched matmul -> clean Mosaic lowering.
    w_b = jnp.broadcast_to(w_ref[...], (tn,) + w_ref.shape)          # (tile_n, K, C)
    z = jnp.einsum("nkc,ncs->nks", w_b, x_ref[...],
                   preferred_element_type=jnp.float32,
                   precision=precision)                               # (tile_n, K, HW)
    m = jnp.max(z, axis=-1)                                           # (tile_n, K)
    s = jnp.sum(jnp.exp(z - m[..., None]), axis=-1)                   # (tile_n, K)
    out_ref[...] = (m + jnp.log(s)).astype(out_ref.dtype)


def _run_nblock(x, w_r, *, precision, target_block_bytes, vmem_limit_cap):
    """x: (N, C, HW); returns raw logsumexp over HW, shape (N, K) f32."""
    N, C, HW = x.shape
    K = w_r.shape[0]
    itemsize = x.dtype.itemsize

    # Per-image VMEM cost inside one block: x slab + z (f32) + exp temp + bcast W.
    per_img = itemsize * C * HW + 8 * K * HW + 4 * K * C
    tile_n = max(1, target_block_bytes // per_img)
    if tile_n >= N:
        tile_n = N                       # whole batch in a single block
        n_blocks = 1
    else:
        tile_n = max(8, (tile_n // 8) * 8)   # output block sublane alignment
        n_blocks = pl.cdiv(N, tile_n)
    n_pad = n_blocks * tile_n
    if n_pad != N:
        # Zero-padded images produce finite garbage logits that are sliced away.
        x = jnp.pad(x, ((0, n_pad - N), (0, 0), (0, 0)))

    x_block_bytes = tile_n * C * HW * itemsize
    vmem_limit = int(min(max(2 * x_block_bytes                     # double-buffered x
                             + tile_n * (8 * K * HW + 4 * K * C)   # z + temp + W bcast
                             + (4 << 20),                          # compiler headroom
                             16 << 20),
                         vmem_limit_cap))

    kernel = functools.partial(_lse_nblock_kernel, precision=precision)
    out = pl.pallas_call(
        kernel,
        out_shape=jax.ShapeDtypeStruct((n_pad, K), jnp.float32),
        grid_spec=pltpu.PrefetchScalarGridSpec(
            num_scalar_prefetch=0,
            grid=(n_blocks,),
            in_specs=[
                pl.BlockSpec((tile_n, C, HW), lambda b: (b, 0, 0)),   # contiguous slab
                pl.BlockSpec((K, C), lambda b: (0, 0)),               # r*W (resident)
            ],
            out_specs=pl.BlockSpec((tile_n, K), lambda b: (b, 0)),
        ),
        compiler_params=pltpu.CompilerParams(
            dimension_semantics=("parallel",),
            vmem_limit_bytes=vmem_limit,
        ),
    )(x, w_r)
    return out[:N]


# ----------------------------------------------------------------------------------
# Path B: HW-tiled online (m, s) accumulator (large feature maps).
# ----------------------------------------------------------------------------------
def _lse_hwtile_kernel(x_ref, w_ref, m_out, s_out, m_sc, s_sc, *,
                       valid_hw, tile_hw, tiles_per_split, needs_mask, precision):
    # x_ref: (C, tile_hw)  w_ref: (K, C)  m_out/s_out: (K, 1)  m_sc/s_sc: (K, 1)
    p = pl.program_id(1)   # reduction split (feeds v7x's 2nd core when N == 1)
    t = pl.program_id(2)   # HW tile within the split (reduction axis, "arbitrary")

    @pl.when(t == 0)
    def _init():
        m_sc[...] = jnp.full_like(m_sc, -jnp.inf)
        s_sc[...] = jnp.zeros_like(s_sc)

    # z = (r*W) @ x_tile -> (K, tile_hw): HW on lanes, K on sublanes.
    z = jnp.dot(w_ref[...], x_ref[...],
                preferred_element_type=jnp.float32, precision=precision)

    if needs_mask:  # compile-time flag: only emitted when padded HW != HW
        lane = (lax.broadcasted_iota(jnp.int32, z.shape, 1)
                + (p * tiles_per_split + t) * tile_hw)
        z = jnp.where(lane < valid_hw, z, -jnp.inf)

    # Online-max update.  The first tile of every split always contains >= 1 valid
    # column (asserted in the wrapper), so m_new is finite whenever m_prev is -inf.
    m_prev = m_sc[...]
    m_new = jnp.maximum(m_prev, jnp.max(z, axis=1, keepdims=True))
    s_sc[...] = (jnp.exp(m_prev - m_new) * s_sc[...]
                 + jnp.sum(jnp.exp(z - m_new), axis=1, keepdims=True))
    m_sc[...] = m_new

    @pl.when(t == pl.num_programs(2) - 1)
    def _finalize():
        m_out[...] = m_sc[...]
        s_out[...] = s_sc[...]


def _run_hwtile(x, w_r, *, precision, target_block_bytes, vmem_limit_cap, tile_hw=None):
    """x: (N, C, HW); returns raw logsumexp over HW, shape (N, K) f32."""
    N, C, HW = x.shape
    K = w_r.shape[0]
    itemsize = x.dtype.itemsize

    if tile_hw is None:
        # Size the spatial tile from a VMEM byte budget (not a flat lane cap) so the
        # per-step DMA amortizes the ~0.35us grid-step overhead.  Per-lane cost:
        # x column (itemsize*C) + z + exp temp (8*K, f32).
        tile_hw = _round_down(max(target_block_bytes // (itemsize * C + 8 * K), 128), 128)
    tile_hw = max(128, _round_down(tile_hw, 128))
    tile_hw = min(tile_hw, pl.cdiv(HW, 128) * 128)   # never exceed (padded) HW

    num_tiles = pl.cdiv(HW, tile_hw)
    # v7x has 2 TensorCores: with N == 1 the "parallel" N axis alone leaves one idle,
    # so split the HW reduction in two and combine partial (m, s) in the epilogue.
    # Harmless on single-core v5e/v6e (same total grid steps).
    n_split = 2 if (N == 1 and num_tiles >= 2) else 1
    tiles_per_split = pl.cdiv(num_tiles, n_split)
    hw_pad = n_split * tiles_per_split * tile_hw
    needs_mask = hw_pad != HW
    if needs_mask:
        x = jnp.pad(x, ((0, 0), (0, 0), (0, hw_pad - HW)))
    # Guard (see kernel comment): every split's first tile must overlap valid data,
    # otherwise the online max could see an all(-inf) tile at t == 0 -> NaN rescale.
    assert (n_split - 1) * tiles_per_split * tile_hw < HW

    x_tile_bytes = C * tile_hw * itemsize
    vmem_limit = int(min(max(3 * x_tile_bytes            # double-buffered x + margin
                             + 8 * K * tile_hw           # z + exp temp (f32)
                             + 2 * K * C * itemsize      # resident weights
                             + (4 << 20),                # compiler headroom
                             16 << 20),
                         vmem_limit_cap))

    kernel = functools.partial(
        _lse_hwtile_kernel,
        valid_hw=HW, tile_hw=tile_hw, tiles_per_split=tiles_per_split,
        needs_mask=needs_mask, precision=precision)

    m_out, s_out = pl.pallas_call(
        kernel,
        out_shape=(jax.ShapeDtypeStruct((N, n_split, K, 1), jnp.float32),
                   jax.ShapeDtypeStruct((N, n_split, K, 1), jnp.float32)),
        grid_spec=pltpu.PrefetchScalarGridSpec(
            num_scalar_prefetch=0,
            grid=(N, n_split, tiles_per_split),
            in_specs=[
                pl.BlockSpec((None, C, tile_hw),
                             lambda n, p, t: (n, 0, p * tiles_per_split + t)),
                pl.BlockSpec((K, C), lambda n, p, t: (0, 0)),       # r*W (resident)
            ],
            out_specs=[
                pl.BlockSpec((None, None, K, 1), lambda n, p, t: (n, p, 0, 0)),
                pl.BlockSpec((None, None, K, 1), lambda n, p, t: (n, p, 0, 0)),
            ],
            scratch_shapes=[
                pltpu.VMEM((K, 1), jnp.float32),   # running max
                pltpu.VMEM((K, 1), jnp.float32),   # running sum of exp
            ],
        ),
        compiler_params=pltpu.CompilerParams(
            dimension_semantics=("parallel", "parallel", "arbitrary"),
            vmem_limit_bytes=vmem_limit,
        ),
    )(x, w_r)

    m = m_out[..., 0]   # (N, n_split, K)
    s = s_out[..., 0]
    if n_split == 1:
        return m[:, 0, :] + jnp.log(s[:, 0, :])
    # Stable combine of the per-split partial logsumexps (tiny: N * n_split * K).
    m_max = jnp.max(m, axis=1)                                     # (N, K)
    s_tot = jnp.sum(s * jnp.exp(m - m_max[:, None, :]), axis=1)    # (N, K)
    return m_max + jnp.log(s_tot)


# ----------------------------------------------------------------------------------
# Wrapper.
# ----------------------------------------------------------------------------------
def logsumexp_pool(x_nchw, conv_weight, conv_bias, *, r=10.0,
                   support_background=False, path="auto", tile_hw=None,
                   compute_dtype=jnp.float32, small_fm_bytes=2 << 20):
    """LogSumExpPool forward.

    x_nchw: (N, C, H, W).  conv_weight: (K, C, 1, 1).  conv_bias: (K,).
    compute_dtype=jnp.bfloat16 halves HBM traffic (~2x on this bandwidth-bound op)
    but deviates from PyTorch f32 Conv2d numerics; default keeps f32.
    """
    N, C, H, W = x_nchw.shape
    K = conv_weight.shape[0]
    HW = H * W

    # NCHW -> (N, C, HW): pure reshape, no HBM transpose pass.
    x = x_nchw.reshape(N, C, HW).astype(compute_dtype)
    # Fold r into the 1x1-conv weights; bias / 1/r / log(HW) applied in the epilogue:
    #   logits = (logsumexp(r*W@x) - log(HW)) / r + b
    w_r = (float(r) * conv_weight.reshape(K, C).astype(jnp.float32)).astype(compute_dtype)

    # HIGHEST (6 bf16 MXU passes) is free filler while HBM-bound; v5e flips MXU-bound
    # around K~80 classes, so back off to HIGH for many-class heads.
    precision = lax.Precision.HIGHEST if K <= 64 else lax.Precision.HIGH

    vmem_cap = _vmem_capacity_bytes()
    if vmem_cap <= (96 << 20):           # v7x-class: 64 MiB per TensorCore
        target_block_bytes = 6 << 20     # ~4-8 MiB block -> <~16 MiB double-buffered
        vmem_limit_cap = (vmem_cap * 72) // 100
    else:                                # v5e / v6e: 128 MiB VMEM
        target_block_bytes = 12 << 20
        vmem_limit_cap = (vmem_cap * 75) // 100

    if path == "auto":
        path = "nblock" if (C * HW * 4 <= small_fm_bytes and tile_hw is None) else "hwtile"

    if path == "nblock":
        lse = _run_nblock(x, w_r, precision=precision,
                          target_block_bytes=target_block_bytes,
                          vmem_limit_cap=vmem_limit_cap)
    else:
        lse = _run_hwtile(x, w_r, precision=precision,
                          target_block_bytes=target_block_bytes,
                          vmem_limit_cap=vmem_limit_cap, tile_hw=tile_hw)

    logits = (lse - float(math.log(HW))) * (1.0 / float(r)) \
             + conv_bias.reshape(1, K).astype(jnp.float32)
    if support_background:
        logits = logits[:, 1:]
    return logits


if __name__ == "__main__":
    # Small shapes consistent with the module's forward: NCHW input.
    N, C, H, W = 2, 4, 16, 16
    classes = 3
    support_background = False
    r = 10.0

    key = jax.random.PRNGKey(0)
    kx, kw, kb, kx2 = jax.random.split(key, 4)

    x = jax.random.normal(kx, (N, C, H, W), dtype=jnp.float32) * 0.5
    conv_weight = jax.random.normal(kw, (classes, C, 1, 1), dtype=jnp.float32) * 0.1
    conv_bias = jax.random.normal(kb, (classes,), dtype=jnp.float32) * 0.1

    # Pure-JAX reference of the same math (naive exp/mean/log like the PyTorch module).
    def reference(xv):
        z = jnp.einsum("nchw,kc->nkhw", xv, conv_weight.reshape(classes, C),
                       precision=lax.Precision.HIGHEST) + conv_bias[None, :, None, None]
        out = jnp.log(jnp.mean(jnp.exp(r * z), axis=(2, 3))) / r
        return out[:, 1:] if support_background else out

    ref = reference(x)

    # 1) Auto path (small feature map -> N-blocked single-shot LSE kernel).
    logits_a = logsumexp_pool(x, conv_weight, conv_bias, r=r,
                              support_background=support_background)
    jax.block_until_ready(logits_a)
    assert logits_a.shape == ref.shape, (logits_a.shape, ref.shape)
    assert jnp.allclose(logits_a, ref, rtol=1e-5, atol=1e-5)

    # 2) Forced HW-tiled path (tile_hw=128 -> multi-tile online accumulator).
    logits_b = logsumexp_pool(x, conv_weight, conv_bias, r=r,
                              support_background=support_background,
                              path="hwtile", tile_hw=128)
    jax.block_until_ready(logits_b)
    assert jnp.allclose(logits_b, ref, rtol=1e-5, atol=1e-5)

    # 3) N == 1 exercises the split reduction (2 partial accumulators + combine).
    logits_c = logsumexp_pool(x[:1], conv_weight, conv_bias, r=r,
                              support_background=support_background,
                              path="hwtile", tile_hw=128)
    jax.block_until_ready(logits_c)
    assert jnp.allclose(logits_c, ref[:1], rtol=1e-5, atol=1e-5)

    # 4) Ragged HW (15x15 = 225) exercises the lane mask on the padded final tile.
    x2 = jax.random.normal(kx2, (N, C, 15, 15), dtype=jnp.float32) * 0.5
    logits_d = logsumexp_pool(x2, conv_weight, conv_bias, r=r,
                              support_background=support_background,
                              path="hwtile", tile_hw=128)
    jax.block_until_ready(logits_d)
    assert jnp.allclose(logits_d, reference(x2), rtol=1e-5, atol=1e-5)

    print("KERNEL_OK")
</pallas_src>

<mosaic_0001>
module attributes {stable_mosaic.version = 11 : i64} {
  func.func @_lse_nblock_kernel(%arg0: i32, %arg1: memref<2x4x256xf32, #tpu.memory_space<vmem>>, %arg2: memref<3x4xf32, #tpu.memory_space<vmem>>, %arg3: memref<2x3xf32, #tpu.memory_space<vmem>>) attributes {dimension_semantics = [#tpu.dimension_semantics<parallel>], iteration_bounds = array<i64: 1>, scalar_prefetch = 0 : i64, scratch_operands = 0 : i64, tpu.core_type = #tpu.core_type<tc>, window_params = [{transform_indices = @transform_0, window_bounds = array<i64: 2, 4, 256>}, {pipeline_mode = #tpu.pipeline_mode<synchronous>, transform_indices = @transform_1, window_bounds = array<i64: 3, 4>}, {transform_indices = @transform_2, window_bounds = array<i64: 2, 3>}]} {
    %c0 = arith.constant 0 : index
    %c0_0 = arith.constant 0 : index
    %0 = vector.load %arg2[%c0, %c0_0] : memref<3x4xf32, #tpu.memory_space<vmem>>, vector<3x4xf32>
    %1 = vector.shape_cast %0 : vector<3x4xf32> to vector<1x3x4xf32>
    %2 = vector.broadcast %1 : vector<1x3x4xf32> to vector<2x3x4xf32>
    %c0_1 = arith.constant 0 : index
    %c0_2 = arith.constant 0 : index
    %c0_3 = arith.constant 0 : index
    %3 = vector.load %arg1[%c0_1, %c0_2, %c0_3] : memref<2x4x256xf32, #tpu.memory_space<vmem>>, vector<2x4x256xf32>
    "tpu.trace_start"() <{level = 10 : i32, message = "nkc,ncs->nks"}> : () -> ()
    %cst = arith.constant dense<0.000000e+00> : vector<2x3x256xf32>
    %4 = tpu.matmul %2, %3, %cst {dimension_numbers = #tpu.dot_dimension_numbers<[2], [1], [1], [2], [0, 0, 0, 1, 1, 2], [0], [0]>, precision = #tpu.contract_precision<fp32>} : vector<2x3x4xf32>, vector<2x4x256xf32>, vector<2x3x256xf32> -> vector<2x3x256xf32>
    "tpu.trace_stop"() : () -> ()
    %cst_4 = arith.constant dense<0xFF800000> : vector<2x3xf32>
    %5 = vector.multi_reduction <maximumf>, %4, %cst_4 [2] : vector<2x3x256xf32> to vector<2x3xf32>
    %6 = vector.shape_cast %5 : vector<2x3xf32> to vector<2x3x1xf32>
    %7 = vector.broadcast %6 : vector<2x3x1xf32> to vector<2x3x256xf32>
    %8 = arith.subf %4, %7 : vector<2x3x256xf32>
    %9 = math.exp %8 : vector<2x3x256xf32>
    %cst_5 = arith.constant dense<0.000000e+00> : vector<2x3xf32>
    %10 = vector.multi_reduction <add>, %9, %cst_5 [2] : vector<2x3x256xf32> to vector<2x3xf32>
    %11 = math.log %10 : vector<2x3xf32>
    %12 = arith.addf %5, %11 : vector<2x3xf32>
    %c0_6 = arith.constant 0 : index
    %c0_7 = arith.constant 0 : index
    %13 = vector.load %arg3[%c0_6, %c0_7] : memref<2x3xf32, #tpu.memory_space<vmem>>, vector<2x3xf32>
    tpu.vector_store %arg3[%c0_6, %c0_7], %12 {strides = array<i32>} : memref<2x3xf32, #tpu.memory_space<vmem>>, vector<2x3xf32>,
    return
  }
  func.func @transform_0(%arg0: i32) -> (i32, i32, i32) {
    %c0_i32 = arith.constant 0 : i32
    %c0_i32_0 = arith.constant 0 : i32
    %c0_i32_1 = arith.constant 0 : i32
    return %arg0, %c0_i32, %c0_i32_0 : i32, i32, i32
  }
  func.func @transform_1(%arg0: i32) -> (i32, i32) {
    %c0_i32 = arith.constant 0 : i32
    %c0_i32_0 = arith.constant 0 : i32
    %c0_i32_1 = arith.constant 0 : i32
    return %c0_i32, %c0_i32_0 : i32, i32
  }
  func.func @transform_2(%arg0: i32) -> (i32, i32) {
    %c0_i32 = arith.constant 0 : i32
    %c0_i32_0 = arith.constant 0 : i32
    return %arg0, %c0_i32 : i32, i32
  }
}

</mosaic_0001>

<llo_original>
// kernel: tpu_custom_call.1
$region0: #{tpu_custom_call.1}
  #allocation0 [shape = 'u32[]', space=smem, size = 0x4, offset = 0x4, fixed_abs, tag = 'smem constant byte address 0x4 - core index']
  #allocation1 [shape = 'u32[144,128]{1,0:T(1,128)}', space=vmem, size = 0x12000, scoped, tag = 'internal scratch']
  %s0 = inlined_call_operand.hbm [shape: f32[2,4,256], index: 0, kind: input, shape index: {}]
  %s1 = inlined_call_operand.hbm [shape: f32[3,4], index: 1, kind: input, shape index: {}]
  %s2 = inlined_call_operand.hbm [shape: f32[2,3], index: 2, kind: output, shape index: {}]
  %s3 = sld [smem:[#allocation0]]
  $region26: #{tpu_custom_call.1} parent=0
    _
  %s5 = ssub.s32 1, %s3
  %s6 = scalar_select 0, %s5, %s3
  $region1: #{tpu_custom_call.1} parent=0
    #allocation2 [shape = 'u8[8192]{0}', space=vmem, size = 0x2000, scoped, tag = 'input window, operand 0, single buffered']
    #allocation3 [shape = 's32[1]{0}', space=sflag, size = 0x4, scoped, tag = 'scoped memory for tpu_custom_call.1']
    #allocation4 [shape = 's32[1]{0}', space=sflag, size = 0x4, scoped, tag = 'scoped memory for tpu_custom_call.1']
    #allocation5 [shape = 'u8[2048]{0}', space=vmem, size = 0x800, scoped, tag = 'input window, operand 1, single buffered']
    #allocation6 [shape = 's32[1]{0}', space=sflag, size = 0x4, scoped, tag = 'scoped memory for tpu_custom_call.1']
    #allocation7 [shape = 'u8[1024]{0}', space=vmem, size = 0x400, scoped, tag = 'output window, operand 0, single buffered']
    %7 = vsyncpa [#allocation3], 0
    %8 = vsyncpa [#allocation6], 0
    %9 = vsyncpa [#allocation4], 0
    // Predicated region
    $region2: #{tpu_custom_call.1} parent=1 // pred_check
      _
    $region3: #{tpu_custom_call.1} parent=1 // pred_check_branch
      %11 = sbr.rel (0) target = $region5
    $region4: #{tpu_custom_call.1} parent=1 // pred_region
      %s13 = ssub.s32 256, 256
      %14 = vsyncadd [#allocation3], %s13
      %s15 = sshll.u32 [#allocation2], 4
      %s16 = int_to_ptr.vmem [resolvable:$true] %s15
      %21 = dma.hbm_to_vmem [thread:$0]  %s0, 256, %s16, [#allocation3], 128, 128, 8
    $region5: #{tpu_custom_call.1} parent=1 // pred_fallthru
      _
    // Predicated region
    $region6: #{tpu_custom_call.1} parent=1 // pred_check
      _
    $region7: #{tpu_custom_call.1} parent=1 // pred_check_branch
      %23 = sbr.rel (0) target = $region9
    $region8: #{tpu_custom_call.1} parent=1 // pred_region
      %s25 = ssub.s32 64, 64
      %26 = vsyncadd [#allocation6], %s25
      %s28 = sshll.u32 [#allocation5], 4
      %s29 = int_to_ptr.vmem [resolvable:$true] %s28
      %31 = dma.hbm_to_vmem [thread:$0]  %s1, 64, %s29, [#allocation6]
    $region9: #{tpu_custom_call.1} parent=1 // pred_fallthru
      _
    // Predicated region
    $region10: #{tpu_custom_call.1} parent=1 // pred_check
      _
    $region11: #{tpu_custom_call.1} parent=1 // pred_check_branch
      %33 = sbr.rel (0) target = $region13
    $region12: #{tpu_custom_call.1} parent=1 // pred_region
      %34 = dma.done [#allocation3], 256
    $region13: #{tpu_custom_call.1} parent=1 // pred_fallthru
      _
    // Predicated region
    $region14: #{tpu_custom_call.1} parent=1 // pred_check
      _
    $region15: #{tpu_custom_call.1} parent=1 // pred_check_branch
      %36 = sbr.rel (0) target = $region17
    $region16: #{tpu_custom_call.1} parent=1 // pred_region
      %37 = dma.done [#allocation6], 64
    $region17: #{tpu_custom_call.1} parent=1 // pred_fallthru
      _
    %v38 = vld [vmem:[#allocation5] sm:$0x7]
    %v39 = vld [vmem:[#allocation2] sm:$0xff]
    %v40 = vld [vmem:[#allocation2 + $0x8] sm:$0xff]
    %v42 = vcombine.high %v39, %v39
    %vm43 = vcmask 31744
    %v45 = vsel %vm43, %v38, 0
    %vm47 = vcmask 1043456
    %v48 = vsel %vm47, %v39, 0
    %v50 = vsel %vm47, %v42, 0
    %v52 = vand.u32 %v50, 4294901760
    %53 = vmatprep.subr.mxu0 %v52
    %v54 = vand.u32 %v48, 4294901760
    %55 = vmatpush1.msra.mxu0 %v54
    %56 = vmatprep.subr.mxu0 0.0
    %57 = vmatpush1.msra.mxu0 0.0
    %58 = vmatprep.subr.mxu0 0.0
    %59 = vmatpush1.msra.mxu0 0.0
    %60 = vmatprep.subr.mxu0 0.0
    %61 = vmatpush1.msra.mxu0 0.0
    %62 = vmatprep.subr.mxu0 0.0
    %63 = vmatpush1.msra.mxu0 0.0
    %64 = vmatprep.subr.mxu0 0.0
    %65 = vmatpush1.msra.mxu0 0.0
    %66 = vmatprep.subr.mxu0 0.0
    %67 = vmatpush1.msra.mxu0 0.0
    %68 = vmatprep.subr.mxu0 0.0
    %69 = vmatpush1.msra.mxu0 0.0
    %70 = vmatprep.subr.mxu0 0.0
    %71 = vmatpush1.msra.mxu0 0.0
    %72 = vmatprep.subr.mxu0 0.0
    %73 = vmatpush1.msra.mxu0 0.0
    %74 = vmatprep.subr.mxu0 0.0
    %75 = vmatpush1.msra.mxu0 0.0
    %76 = vmatprep.subr.mxu0 0.0
    %77 = vmatpush1.msra.mxu0 0.0
    %78 = vmatprep.subr.mxu0 0.0
    %79 = vmatpush1.msra.mxu0 0.0
    %80 = vmatprep.subr.mxu0 0.0
    %81 = vmatpush1.msra.mxu0 0.0
    %82 = vmatprep.subr.mxu0 0.0
    %83 = vmatpush1.msra.mxu0 0.0
    %84 = vmatprep.subr.mxu0 0.0
    %85 = vmatpush1.msra.mxu0 0.0
    %86 = vmatprep.subr.mxu0 0.0
    %87 = vmatpush1.msra.mxu0 0.0
    %88 = vmatprep.subr.mxu0 0.0
    %89 = vmatpush1.msra.mxu0 0.0
    %90 = vmatprep.subr.mxu0 0.0
    %91 = vmatpush1.msra.mxu0 0.0
    %92 = vmatprep.subr.mxu0 0.0
    %93 = vmatpush1.msra.mxu0 0.0
    %94 = vmatprep.subr.mxu0 0.0
    %95 = vmatpush1.msra.mxu0 0.0
    %96 = vmatprep.subr.mxu0 0.0
    %97 = vmatpush1.msra.mxu0 0.0
    %98 = vmatprep.subr.mxu0 0.0
    %99 = vmatpush1.msra.mxu0 0.0
    %100 = vmatprep.subr.mxu0 0.0
    %101 = vmatpush1.msra.mxu0 0.0
    %102 = vmatprep.subr.mxu0 0.0
    %103 = vmatpush1.msra.mxu0 0.0
    %104 = vmatprep.subr.mxu0 0.0
    %105 = vmatpush1.msra.mxu0 0.0
    %106 = vmatprep.subr.mxu0 0.0
    %107 = vmatpush1.msra.mxu0 0.0
    %108 = vmatprep.subr.mxu0 0.0
    %109 = vmatpush1.msra.mxu0 0.0
    %110 = vmatprep.subr.mxu0 0.0
    %111 = vmatpush1.msra.mxu0 0.0
    %112 = vmatprep.subr.mxu0 0.0
    %113 = vmatpush1.msra.mxu0 0.0
    %114 = vmatprep.subr.mxu0 0.0
    %115 = vmatpush1.msra.mxu0 0.0
    %116 = vmatprep.subr.mxu0 0.0
    %117 = vmatpush1.msra.mxu0 0.0
    %118 = vmatprep.mubr.f32.mxu0 0.0
    %v119 = vand.u32 %v45, 4294901760
    %v120 = vsub.f32 %v45, %v119
    %v121 = vand.u32 %v120, 4294901760
    %v122 = vsub.f32 %v120, %v121
    %v123 = vand.u32 %v122, 4294901760
    %124 = vmatmul.mubr.f32.gmra.mrb[0].mxu0 %v123
    %v125 = vpop.f32.mrb[0].mxu0
    %v126 = vadd.f32 0.0, %v125
    %v127 = vpop.f32.mrb[0].mxu0
    %v128 = vadd.f32 0.0, %v127
    %129 = vdwg.mxu0
    %v130 = vand.u32 %v50, 4294901760
    %v131 = vsub.f32 %v50, %v130
    %v132 = vand.u32 %v131, 4294901760
    %v133 = vsub.f32 %v131, %v132
    %v134 = vand.u32 %v133, 4294901760
    %135 = vmatprep.subr.mxu0 %v134
    %v136 = vand.u32 %v48, 4294901760
    %v137 = vsub.f32 %v48, %v136
    %v138 = vand.u32 %v137, 4294901760
    %v139 = vsub.f32 %v137, %v138
    %v140 = vand.u32 %v139, 4294901760
    %141 = vmatpush1.msra.mxu0 %v140
    %142 = vmatprep.subr.mxu0 0.0
    %143 = vmatpush1.msra.mxu0 0.0
    %144 = vmatprep.subr.mxu0 0.0
    %145 = vmatpush1.msra.mxu0 0.0
    %146 = vmatprep.subr.mxu0 0.0
    %147 = vmatpush1.msra.mxu0 0.0
    %148 = vmatprep.subr.mxu0 0.0
    %149 = vmatpush1.msra.mxu0 0.0
    %150 = vmatprep.subr.mxu0 0.0
    %151 = vmatpush1.msra.mxu0 0.0
    %152 = vmatprep.subr.mxu0 0.0
    %153 = vmatpush1.msra.mxu0 0.0
    %154 = vmatprep.subr.mxu0 0.0
    %155 = vmatpush1.msra.mxu0 0.0
    %156 = vmatprep.subr.mxu0 0.0
    %157 = vmatpush1.msra.mxu0 0.0
    %158 = vmatprep.subr.mxu0 0.0
    %159 = vmatpush1.msra.mxu0 0.0
    %160 = vmatprep.subr.mxu0 0.0
    %161 = vmatpush1.msra.mxu0 0.0
    %162 = vmatprep.subr.mxu0 0.0
    %163 = vmatpush1.msra.mxu0 0.0
    %164 = vmatprep.subr.mxu0 0.0
    %165 = vmatpush1.msra.mxu0 0.0
    %166 = vmatprep.subr.mxu0 0.0
    %167 = vmatpush1.msra.mxu0 0.0
    %168 = vmatprep.subr.mxu0 0.0
    %169 = vmatpush1.msra.mxu0 0.0
    %170 = vmatprep.subr.mxu0 0.0
    %171 = vmatpush1.msra.mxu0 0.0
    %172 = vmatprep.subr.mxu0 0.0
    %173 = vmatpush1.msra.mxu0 0.0
    %174 = vmatprep.subr.mxu0 0.0
    %175 = vmatpush1.msra.mxu0 0.0
    %176 = vmatprep.subr.mxu0 0.0
    %177 = vmatpush1.msra.mxu0 0.0
    %178 = vmatprep.subr.mxu0 0.0
    %179 = vmatpush1.msra.mxu0 0.0
    %180 = vmatprep.subr.mxu0 0.0
    %181 = vmatpush1.msra.mxu0 0.0
    %182 = vmatprep.subr.mxu0 0.0
    %183 = vmatpush1.msra.mxu0 0.0
    %184 = vmatprep.subr.mxu0 0.0
    %185 = vmatpush1.msra.mxu0 0.0
    %186 = vmatprep.subr.mxu0 0.0
    %187 = vmatpush1.msra.mxu0 0.0
    %188 = vmatprep.subr.mxu0 0.0
    %189 = vmatpush1.msra.mxu0 0.0
    %190 = vmatprep.subr.mxu0 0.0
    %191 = vmatpush1.msra.mxu0 0.0
    %192 = vmatprep.subr.mxu0 0.0
    %193 = vmatpush1.msra.mxu0 0.0
    %194 = vmatprep.subr.mxu0 0.0
    %195 = vmatpush1.msra.mxu0 0.0
    %196 = vmatprep.subr.mxu0 0.0
    %197 = vmatpush1.msra.mxu0 0.0
    %198 = vmatprep.subr.mxu0 0.0
    %199 = vmatpush1.msra.mxu0 0.0
    %200 = vmatprep.subr.mxu0 0.0
    %201 = vmatpush1.msra.mxu0 0.0
    %202 = vmatprep.subr.mxu0 0.0
    %203 = vmatpush1.msra.mxu0 0.0
    %204 = vmatprep.mubr.f32.mxu0 0.0
    %v205 = vand.u32 %v45, 4294901760
    %206 = vmatmul.mubr.f32.gmra.mrb[0].mxu0 %v205
    %v207 = vpop.f32.mrb[0].mxu0
    %v208 = vadd.f32 %v126, %v207
    %v209 = vpop.f32.mrb[0].mxu0
    %v210 = vadd.f32 %v128, %v209
    %211 = vdwg.mxu0
    %v212 = vand.u32 %v50, 4294901760
    %v213 = vsub.f32 %v50, %v212
    %214 = vmatprep.subr.mxu0 %v213
    %v215 = vand.u32 %v48, 4294901760
    %v216 = vsub.f32 %v48, %v215
    %217 = vmatpush1.msra.mxu0 %v216
    %218 = vmatprep.subr.mxu0 0.0
    %219 = vmatpush1.msra.mxu0 0.0
    %220 = vmatprep.subr.mxu0 0.0
    %221 = vmatpush1.msra.mxu0 0.0
    %222 = vmatprep.subr.mxu0 0.0
    %223 = vmatpush1.msra.mxu0 0.0
    %224 = vmatprep.subr.mxu0 0.0
    %225 = vmatpush1.msra.mxu0 0.0
    %226 = vmatprep.subr.mxu0 0.0
    %227 = vmatpush1.msra.mxu0 0.0
    %228 = vmatprep.subr.mxu0 0.0
    %229 = vmatpush1.msra.mxu0 0.0
    %230 = vmatprep.subr.mxu0 0.0
    %231 = vmatpush1.msra.mxu0 0.0
    %232 = vmatprep.subr.mxu0 0.0
    %233 = vmatpush1.msra.mxu0 0.0
    %234 = vmatprep.subr.mxu0 0.0
    %235 = vmatpush1.msra.mxu0 0.0
    %236 = vmatprep.subr.mxu0 0.0
    %237 = vmatpush1.msra.mxu0 0.0
    %238 = vmatprep.subr.mxu0 0.0
    %239 = vmatpush1.msra.mxu0 0.0
    %240 = vmatprep.subr.mxu0 0.0
    %241 = vmatpush1.msra.mxu0 0.0
    %242 = vmatprep.subr.mxu0 0.0
    %243 = vmatpush1.msra.mxu0 0.0
    %244 = vmatprep.subr.mxu0 0.0
    %245 = vmatpush1.msra.mxu0 0.0
    %246 = vmatprep.subr.mxu0 0.0
    %247 = vmatpush1.msra.mxu0 0.0
    %248 = vmatprep.subr.mxu0 0.0
    %249 = vmatpush1.msra.mxu0 0.0
    %250 = vmatprep.subr.mxu0 0.0
    %251 = vmatpush1.msra.mxu0 0.0
    %252 = vmatprep.subr.mxu0 0.0
    %253 = vmatpush1.msra.mxu0 0.0
    %254 = vmatprep.subr.mxu0 0.0
    %255 = vmatpush1.msra.mxu0 0.0
    %256 = vmatprep.subr.mxu0 0.0
    %257 = vmatpush1.msra.mxu0 0.0
    %258 = vmatprep.subr.mxu0 0.0
    %259 = vmatpush1.msra.mxu0 0.0
    %260 = vmatprep.subr.mxu0 0.0
    %261 = vmatpush1.msra.mxu0 0.0
    %262 = vmatprep.subr.mxu0 0.0
    %263 = vmatpush1.msra.mxu0 0.0
    %264 = vmatprep.subr.mxu0 0.0
    %265 = vmatpush1.msra.mxu0 0.0
    %266 = vmatprep.subr.mxu0 0.0
    %267 = vmatpush1.msra.mxu0 0.0
    %268 = vmatprep.subr.mxu0 0.0
    %269 = vmatpush1.msra.mxu0 0.0
    %270 = vmatprep.subr.mxu0 0.0
    %271 = vmatpush1.msra.mxu0 0.0
    %272 = vmatprep.subr.mxu0 0.0
    %273 = vmatpush1.msra.mxu0 0.0
    %274 = vmatprep.subr.mxu0 0.0
    %275 = vmatpush1.msra.mxu0 0.0
    %276 = vmatprep.subr.mxu0 0.0
    %277 = vmatpush1.msra.mxu0 0.0
    %278 = vmatprep.subr.mxu0 0.0
    %279 = vmatpush1.msra.mxu0 0.0
    %280 = vmatprep.mubr.f32.mxu0 0.0
    %v281 = vand.u32 %v45, 4294901760
    %v282 = vsub.f32 %v45, %v281
    %283 = vmatmul.mubr.f32.gmra.mrb[0].mxu0 %v282
    %v284 = vpop.f32.mrb[0].mxu0
    %v285 = vadd.f32 %v208, %v284
    %v286 = vpop.f32.mrb[0].mxu0
    %v287 = vadd.f32 %v210, %v286
    %288 = vdwg.mxu0
    %v289 = vand.u32 %v50, 4294901760
    %290 = vmatprep.subr.mxu0 %v289
    %v291 = vand.u32 %v48, 4294901760
    %292 = vmatpush1.msra.mxu0 %v291
    %293 = vmatprep.subr.mxu0 0.0
    %294 = vmatpush1.msra.mxu0 0.0
    %295 = vmatprep.subr.mxu0 0.0
    %296 = vmatpush1.msra.mxu0 0.0
    %297 = vmatprep.subr.mxu0 0.0
    %298 = vmatpush1.msra.mxu0 0.0
    %299 = vmatprep.subr.mxu0 0.0
    %300 = vmatpush1.msra.mxu0 0.0
    %301 = vmatprep.subr.mxu0 0.0
    %302 = vmatpush1.msra.mxu0 0.0
    %303 = vmatprep.subr.mxu0 0.0
    %304 = vmatpush1.msra.mxu0 0.0
    %305 = vmatprep.subr.mxu0 0.0
    %306 = vmatpush1.msra.mxu0 0.0
    %307 = vmatprep.subr.mxu0 0.0
    %308 = vmatpush1.msra.mxu0 0.0
    %309 = vmatprep.subr.mxu0 0.0
    %310 = vmatpush1.msra.mxu0 0.0
    %311 = vmatprep.subr.mxu0 0.0
    %312 = vmatpush1.msra.mxu0 0.0
    %313 = vmatprep.subr.mxu0 0.0
    %314 = vmatpush1.msra.mxu0 0.0
    %315 = vmatprep.subr.mxu0 0.0
    %316 = vmatpush1.msra.mxu0 0.0
    %317 = vmatprep.subr.mxu0 0.0
    %318 = vmatpush1.msra.mxu0 0.0
    %319 = vmatprep.subr.mxu0 0.0
    %320 = vmatpush1.msra.mxu0 0.0
    %321 = vmatprep.subr.mxu0 0.0
    %322 = vmatpush1.msra.mxu0 0.0
    %323 = vmatprep.subr.mxu0 0.0
    %324 = vmatpush1.msra.mxu0 0.0
    %325 = vmatprep.subr.mxu0 0.0
    %326 = vmatpush1.msra.mxu0 0.0
    %327 = vmatprep.subr.mxu0 0.0
    %328 = vmatpush1.msra.mxu0 0.0
    %329 = vmatprep.subr.mxu0 0.0
    %330 = vmatpush1.msra.mxu0 0.0
    %331 = vmatprep.subr.mxu0 0.0
    %332 = vmatpush1.msra.mxu0 0.0
    %333 = vmatprep.subr.mxu0 0.0
    %334 = vmatpush1.msra.mxu0 0.0
    %335 = vmatprep.subr.mxu0 0.0
    %336 = vmatpush1.msra.mxu0 0.0
    %337 = vmatprep.subr.mxu0 0.0
    %338 = vmatpush1.msra.mxu0 0.0
    %339 = vmatprep.subr.mxu0 0.0
    %340 = vmatpush1.msra.mxu0 0.0
    %341 = vmatprep.subr.mxu0 0.0
    %342 = vmatpush1.msra.mxu0 0.0
    %343 = vmatprep.subr.mxu0 0.0
    %344 = vmatpush1.msra.mxu0 0.0
    %345 = vmatprep.subr.mxu0 0.0
    %346 = vmatpush1.msra.mxu0 0.0
    %347 = vmatprep.subr.mxu0 0.0
    %348 = vmatpush1.msra.mxu0 0.0
    %349 = vmatprep.subr.mxu0 0.0
    %350 = vmatpush1.msra.mxu0 0.0
    %351 = vmatprep.subr.mxu0 0.0
    %352 = vmatpush1.msra.mxu0 0.0
    %353 = vmatprep.subr.mxu0 0.0
    %354 = vmatpush1.msra.mxu0 0.0
    %355 = vmatprep.mubr.f32.mxu0 0.0
    %v356 = vand.u32 %v45, 4294901760
    %v357 = vsub.f32 %v45, %v356
    %v358 = vand.u32 %v357, 4294901760
    %359 = vmatmul.mubr.f32.gmra.mrb[0].mxu0 %v358
    %v360 = vpop.f32.mrb[0].mxu0
    %v361 = vadd.f32 %v285, %v360
    %v362 = vpop.f32.mrb[0].mxu0
    %v363 = vadd.f32 %v287, %v362
    %364 = vdwg.mxu0
    %v365 = vand.u32 %v50, 4294901760
    %v366 = vsub.f32 %v50, %v365
    %v367 = vand.u32 %v366, 4294901760
    %368 = vmatprep.subr.mxu0 %v367
    %v369 = vand.u32 %v48, 4294901760
    %v370 = vsub.f32 %v48, %v369
    %v371 = vand.u32 %v370, 4294901760
    %372 = vmatpush1.msra.mxu0 %v371
    %373 = vmatprep.subr.mxu0 0.0
    %374 = vmatpush1.msra.mxu0 0.0
    %375 = vmatprep.subr.mxu0 0.0
    %376 = vmatpush1.msra.mxu0 0.0
    %377 = vmatprep.subr.mxu0 0.0
    %378 = vmatpush1.msra.mxu0 0.0
    %379 = vmatprep.subr.mxu0 0.0
    %380 = vmatpush1.msra.mxu0 0.0
    %381 = vmatprep.subr.mxu0 0.0
    %382 = vmatpush1.msra.mxu0 0.0
    %383 = vmatprep.subr.mxu0 0.0
    %384 = vmatpush1.msra.mxu0 0.0
    %385 = vmatprep.subr.mxu0 0.0
    %386 = vmatpush1.msra.mxu0 0.0
    %387 = vmatprep.subr.mxu0 0.0
    %388 = vmatpush1.msra.mxu0 0.0
    %389 = vmatprep.subr.mxu0 0.0
    %390 = vmatpush1.msra.mxu0 0.0
    %391 = vmatprep.subr.mxu0 0.0
    %392 = vmatpush1.msra.mxu0 0.0
    %393 = vmatprep.subr.mxu0 0.0
    %394 = vmatpush1.msra.mxu0 0.0
    %395 = vmatprep.subr.mxu0 0.0
    %396 = vmatpush1.msra.mxu0 0.0
    %397 = vmatprep.subr.mxu0 0.0
    %398 = vmatpush1.msra.mxu0 0.0
    %399 = vmatprep.subr.mxu0 0.0
    %400 = vmatpush1.msra.mxu0 0.0
    %401 = vmatprep.subr.mxu0 0.0
    %402 = vmatpush1.msra.mxu0 0.0
    %403 = vmatprep.subr.mxu0 0.0
    %404 = vmatpush1.msra.mxu0 0.0
    %405 = vmatprep.subr.mxu0 0.0
    %406 = vmatpush1.msra.mxu0 0.0
    %407 = vmatprep.subr.mxu0 0.0
    %408 = vmatpush1.msra.mxu0 0.0
    %409 = vmatprep.subr.mxu0 0.0
    %410 = vmatpush1.msra.mxu0 0.0
    %411 = vmatprep.subr.mxu0 0.0
    %412 = vmatpush1.msra.mxu0 0.0
    %413 = vmatprep.subr.mxu0 0.0
    %414 = vmatpush1.msra.mxu0 0.0
    %415 = vmatprep.subr.mxu0 0.0
    %416 = vmatpush1.msra.mxu0 0.0
    %417 = vmatprep.subr.mxu0 0.0
    %418 = vmatpush1.msra.mxu0 0.0
    %419 = vmatprep.subr.mxu0 0.0
    %420 = vmatpush1.msra.mxu0 0.0
    %421 = vmatprep.subr.mxu0 0.0
    %422 = vmatpush1.msra.mxu0 0.0
    %423 = vmatprep.subr.mxu0 0.0
    %424 = vmatpush1.msra.mxu0 0.0
    %425 = vmatprep.subr.mxu0 0.0
    %426 = vmatpush1.msra.mxu0 0.0
    %427 = vmatprep.subr.mxu0 0.0
    %428 = vmatpush1.msra.mxu0 0.0
    %429 = vmatprep.subr.mxu0 0.0
    %430 = vmatpush1.msra.mxu0 0.0
    %431 = vmatprep.subr.mxu0 0.0
    %432 = vmatpush1.msra.mxu0 0.0
    %433 = vmatprep.subr.mxu0 0.0
    %434 = vmatpush1.msra.mxu0 0.0
    %435 = vmatprep.mubr.f32.mxu0 0.0
    %v436 = vand.u32 %v45, 4294901760
    %437 = vmatmul.mubr.f32.gmra.mrb[0].mxu0 %v436
    %v438 = vpop.f32.mrb[0].mxu0
    %v439 = vadd.f32 %v361, %v438
    %v440 = vpop.f32.mrb[0].mxu0
    %v441 = vadd.f32 %v363, %v440
    %442 = vdwg.mxu0
    %v443 = vand.u32 %v50, 4294901760
    %444 = vmatprep.subr.mxu0 %v443
    %v445 = vand.u32 %v48, 4294901760
    %446 = vmatpush1.msra.mxu0 %v445
    %447 = vmatprep.subr.mxu0 0.0
    %448 = vmatpush1.msra.mxu0 0.0
    %449 = vmatprep.subr.mxu0 0.0
    %450 = vmatpush1.msra.mxu0 0.0
    %451 = vmatprep.subr.mxu0 0.0
    %452 = vmatpush1.msra.mxu0 0.0
    %453 = vmatprep.subr.mxu0 0.0
    %454 = vmatpush1.msra.mxu0 0.0
    %455 = vmatprep.subr.mxu0 0.0
    %456 = vmatpush1.msra.mxu0 0.0
    %457 = vmatprep.subr.mxu0 0.0
    %458 = vmatpush1.msra.mxu0 0.0
    %459 = vmatprep.subr.mxu0 0.0
    %460 = vmatpush1.msra.mxu0 0.0
    %461 = vmatprep.subr.mxu0 0.0
    %462 = vmatpush1.msra.mxu0 0.0
    %463 = vmatprep.subr.mxu0 0.0
    %464 = vmatpush1.msra.mxu0 0.0
    %465 = vmatprep.subr.mxu0 0.0
    %466 = vmatpush1.msra.mxu0 0.0
    %467 = vmatprep.subr.mxu0 0.0
    %468 = vmatpush1.msra.mxu0 0.0
    %469 = vmatprep.subr.mxu0 0.0
    %470 = vmatpush1.msra.mxu0 0.0
    %471 = vmatprep.subr.mxu0 0.0
    %472 = vmatpush1.msra.mxu0 0.0
    %473 = vmatprep.subr.mxu0 0.0
    %474 = vmatpush1.msra.mxu0 0.0
    %475 = vmatprep.subr.mxu0 0.0
    %476 = vmatpush1.msra.mxu0 0.0
    %477 = vmatprep.subr.mxu0 0.0
    %478 = vmatpush1.msra.mxu0 0.0
    %479 = vmatprep.subr.mxu0 0.0
    %480 = vmatpush1.msra.mxu0 0.0
    %481 = vmatprep.subr.mxu0 0.0
    %482 = vmatpush1.msra.mxu0 0.0
    %483 = vmatprep.subr.mxu0 0.0
    %484 = vmatpush1.msra.mxu0 0.0
    %485 = vmatprep.subr.mxu0 0.0
    %486 = vmatpush1.msra.mxu0 0.0
    %487 = vmatprep.subr.mxu0 0.0
    %488 = vmatpush1.msra.mxu0 0.0
    %489 = vmatprep.subr.mxu0 0.0
    %490 = vmatpush1.msra.mxu0 0.0
    %491 = vmatprep.subr.mxu0 0.0
    %492 = vmatpush1.msra.mxu0 0.0
    %493 = vmatprep.subr.mxu0 0.0
    %494 = vmatpush1.msra.mxu0 0.0
    %495 = vmatprep.subr.mxu0 0.0
    %496 = vmatpush1.msra.mxu0 0.0
    %497 = vmatprep.subr.mxu0 0.0
    %498 = vmatpush1.msra.mxu0 0.0
    %499 = vmatprep.subr.mxu0 0.0
    %500 = vmatpush1.msra.mxu0 0.0
    %501 = vmatprep.subr.mxu0 0.0
    %502 = vmatpush1.msra.mxu0 0.0
    %503 = vmatprep.subr.mxu0 0.0
    %504 = vmatpush1.msra.mxu0 0.0
    %505 = vmatprep.subr.mxu0 0.0
    %506 = vmatpush1.msra.mxu0 0.0
    %507 = vmatprep.subr.mxu0 0.0
    %508 = vmatpush1.msra.mxu0 0.0
    %509 = vmatprep.mubr.f32.mxu0 0.0
    %v510 = vand.u32 %v45, 4294901760
    %511 = vmatmul.mubr.f32.gmra.mrb[0].mxu0 %v510
    %v512 = vpop.f32.mrb[0].mxu0
    %v513 = vadd.f32 %v439, %v512
    %v514 = vpop.f32.mrb[0].mxu0
    %v515 = vadd.f32 %v441, %v514
    %516 = vdwg.mxu0
    %v518 = vcombine.high %v40, %v40
    %v519 = vsel %vm47, %v40, 0
    %v521 = vsel %vm47, %v518, 0
    %v523 = vand.u32 %v521, 4294901760
    %524 = vmatprep.subr.mxu0 %v523
    %v525 = vand.u32 %v519, 4294901760
    %526 = vmatpush1.msra.mxu0 %v525
    %527 = vmatprep.subr.mxu0 0.0
    %528 = vmatpush1.msra.mxu0 0.0
    %529 = vmatprep.subr.mxu0 0.0
    %530 = vmatpush1.msra.mxu0 0.0
    %531 = vmatprep.subr.mxu0 0.0
    %532 = vmatpush1.msra.mxu0 0.0
    %533 = vmatprep.subr.mxu0 0.0
    %534 = vmatpush1.msra.mxu0 0.0
    %535 = vmatprep.subr.mxu0 0.0
    %536 = vmatpush1.msra.mxu0 0.0
    %537 = vmatprep.subr.mxu0 0.0
    %538 = vmatpush1.msra.mxu0 0.0
    %539 = vmatprep.subr.mxu0 0.0
    %540 = vmatpush1.msra.mxu0 0.0
    %541 = vmatprep.subr.mxu0 0.0
    %542 = vmatpush1.msra.mxu0 0.0
    %543 = vmatprep.subr.mxu0 0.0
    %544 = vmatpush1.msra.mxu0 0.0
    %545 = vmatprep.subr.mxu0 0.0
    %546 = vmatpush1.msra.mxu0 0.0
    %547 = vmatprep.subr.mxu0 0.0
    %548 = vmatpush1.msra.mxu0 0.0
    %549 = vmatprep.subr.mxu0 0.0
    %550 = vmatpush1.msra.mxu0 0.0
    %551 = vmatprep.subr.mxu0 0.0
    %552 = vmatpush1.msra.mxu0 0.0
    %553 = vmatprep.subr.mxu0 0.0
    %554 = vmatpush1.msra.mxu0 0.0
    %555 = vmatprep.subr.mxu0 0.0
    %556 = vmatpush1.msra.mxu0 0.0
    %557 = vmatprep.subr.mxu0 0.0
    %558 = vmatpush1.msra.mxu0 0.0
    %559 = vmatprep.subr.mxu0 0.0
    %560 = vmatpush1.msra.mxu0 0.0
    %561 = vmatprep.subr.mxu0 0.0
    %562 = vmatpush1.msra.mxu0 0.0
    %563 = vmatprep.subr.mxu0 0.0
    %564 = vmatpush1.msra.mxu0 0.0
    %565 = vmatprep.subr.mxu0 0.0
    %566 = vmatpush1.msra.mxu0 0.0
    %567 = vmatprep.subr.mxu0 0.0
    %568 = vmatpush1.msra.mxu0 0.0
    %569 = vmatprep.subr.mxu0 0.0
    %570 = vmatpush1.msra.mxu0 0.0
    %571 = vmatprep.subr.mxu0 0.0
    %572 = vmatpush1.msra.mxu0 0.0
    %573 = vmatprep.subr.mxu0 0.0
    %574 = vmatpush1.msra.mxu0 0.0
    %575 = vmatprep.subr.mxu0 0.0
    %576 = vmatpush1.msra.mxu0 0.0
    %577 = vmatprep.subr.mxu0 0.0
    %578 = vmatpush1.msra.mxu0 0.0
    %579 = vmatprep.subr.mxu0 0.0
    %580 = vmatpush1.msra.mxu0 0.0
    %581 = vmatprep.subr.mxu0 0.0
    %582 = vmatpush1.msra.mxu0 0.0
    %583 = vmatprep.subr.mxu0 0.0
    %584 = vmatpush1.msra.mxu0 0.0
    %585 = vmatprep.subr.mxu0 0.0
    %586 = vmatpush1.msra.mxu0 0.0
    %587 = vmatprep.subr.mxu0 0.0
    %588 = vmatpush1.msra.mxu0 0.0
    %589 = vmatprep.mubr.f32.mxu0 0.0
    %v590 = vand.u32 %v45, 4294901760
    %v591 = vsub.f32 %v45, %v590
    %v592 = vand.u32 %v591, 4294901760
    %v593 = vsub.f32 %v591, %v592
    %v594 = vand.u32 %v593, 4294901760
    %595 = vmatmul.mubr.f32.gmra.mrb[0].mxu0 %v594
    %v596 = vpop.f32.mrb[0].mxu0
    %v597 = vadd.f32 0.0, %v596
    %v598 = vpop.f32.mrb[0].mxu0
    %v599 = vadd.f32 0.0, %v598
    %600 = vdwg.mxu0
    %v601 = vand.u32 %v521, 4294901760
    %v602 = vsub.f32 %v521, %v601
    %v603 = vand.u32 %v602, 4294901760
    %v604 = vsub.f32 %v602, %v603
    %v605 = vand.u32 %v604, 4294901760
    %606 = vmatprep.subr.mxu0 %v605
    %v607 = vand.u32 %v519, 4294901760
    %v608 = vsub.f32 %v519, %v607
    %v609 = vand.u32 %v608, 4294901760
    %v610 = vsub.f32 %v608, %v609
    %v611 = vand.u32 %v610, 4294901760
    %612 = vmatpush1.msra.mxu0 %v611
    %613 = vmatprep.subr.mxu0 0.0
    %614 = vmatpush1.msra.mxu0 0.0
    %615 = vmatprep.subr.mxu0 0.0
    %616 = vmatpush1.msra.mxu0 0.0
    %617 = vmatprep.subr.mxu0 0.0
    %618 = vmatpush1.msra.mxu0 0.0
    %619 = vmatprep.subr.mxu0 0.0
    %620 = vmatpush1.msra.mxu0 0.0
    %621 = vmatprep.subr.mxu0 0.0
    %622 = vmatpush1.msra.mxu0 0.0
    %623 = vmatprep.subr.mxu0 0.0
    %624 = vmatpush1.msra.mxu0 0.0
    %625 = vmatprep.subr.mxu0 0.0
    %626 = vmatpush1.msra.mxu0 0.0
    %627 = vmatprep.subr.mxu0 0.0
    %628 = vmatpush1.msra.mxu0 0.0
    %629 = vmatprep.subr.mxu0 0.0
    %630 = vmatpush1.msra.mxu0 0.0
    %631 = vmatprep.subr.mxu0 0.0
    %632 = vmatpush1.msra.mxu0 0.0
    %633 = vmatprep.subr.mxu0 0.0
    %634 = vmatpush1.msra.mxu0 0.0
    %635 = vmatprep.subr.mxu0 0.0
    %636 = vmatpush1.msra.mxu0 0.0
    %637 = vmatprep.subr.mxu0 0.0
    %638 = vmatpush1.msra.mxu0 0.0
    %639 = vmatprep.subr.mxu0 0.0
    %640 = vmatpush1.msra.mxu0 0.0
    %641 = vmatprep.subr.mxu0 0.0
    %642 = vmatpush1.msra.mxu0 0.0
    %643 = vmatprep.subr.mxu0 0.0
    %644 = vmatpush1.msra.mxu0 0.0
    %645 = vmatprep.subr.mxu0 0.0
    %646 = vmatpush1.msra.mxu0 0.0
    %647 = vmatprep.subr.mxu0 0.0
    %648 = vmatpush1.msra.mxu0 0.0
    %649 = vmatprep.subr.mxu0 0.0
    %650 = vmatpush1.msra.mxu0 0.0
    %651 = vmatprep.subr.mxu0 0.0
    %652 = vmatpush1.msra.mxu0 0.0
    %653 = vmatprep.subr.mxu0 0.0
    %654 = vmatpush1.msra.mxu0 0.0
    %655 = vmatprep.subr.mxu0 0.0
    %656 = vmatpush1.msra.mxu0 0.0
    %657 = vmatprep.subr.mxu0 0.0
    %658 = vmatpush1.msra.mxu0 0.0
    %659 = vmatprep.subr.mxu0 0.0
    %660 = vmatpush1.msra.mxu0 0.0
    %661 = vmatprep.subr.mxu0 0.0
    %662 = vmatpush1.msra.mxu0 0.0
    %663 = vmatprep.subr.mxu0 0.0
    %664 = vmatpush1.msra.mxu0 0.0
    %665 = vmatprep.subr.mxu0 0.0
    %666 = vmatpush1.msra.mxu0 0.0
    %667 = vmatprep.subr.mxu0 0.0
    %668 = vmatpush1.msra.mxu0 0.0
    %669 = vmatprep.subr.mxu0 0.0
    %670 = vmatpush1.msra.mxu0 0.0
    %671 = vmatprep.subr.mxu0 0.0
    %672 = vmatpush1.msra.mxu0 0.0
    %673 = vmatprep.subr.mxu0 0.0
    %674 = vmatpush1.msra.mxu0 0.0
    %675 = vmatprep.mubr.f32.mxu0 0.0
    %v676 = vand.u32 %v45, 4294901760
    %677 = vmatmul.mubr.f32.gmra.mrb[0].mxu0 %v676
    %v678 = vpop.f32.mrb[0].mxu0
    %v679 = vadd.f32 %v597, %v678
    %v680 = vpop.f32.mrb[0].mxu0
    %v681 = vadd.f32 %v599, %v680
    %682 = vdwg.mxu0
    %v683 = vand.u32 %v521, 4294901760
    %v684 = vsub.f32 %v521, %v683
    %685 = vmatprep.subr.mxu0 %v684
    %v686 = vand.u32 %v519, 4294901760
    %v687 = vsub.f32 %v519, %v686
    %688 = vmatpush1.msra.mxu0 %v687
    %689 = vmatprep.subr.mxu0 0.0
    %690 = vmatpush1.msra.mxu0 0.0
    %691 = vmatprep.subr.mxu0 0.0
    %692 = vmatpush1.msra.mxu0 0.0
    %693 = vmatprep.subr.mxu0 0.0
    %694 = vmatpush1.msra.mxu0 0.0
    %695 = vmatprep.subr.mxu0 0.0
    %696 = vmatpush1.msra.mxu0 0.0
    %697 = vmatprep.subr.mxu0 0.0
    %698 = vmatpush1.msra.mxu0 0.0
    %699 = vmatprep.subr.mxu0 0.0
    %700 = vmatpush1.msra.mxu0 0.0
    %701 = vmatprep.subr.mxu0 0.0
    %702 = vmatpush1.msra.mxu0 0.0
    %703 = vmatprep.subr.mxu0 0.0
    %704 = vmatpush1.msra.mxu0 0.0
    %705 = vmatprep.subr.mxu0 0.0
    %706 = vmatpush1.msra.mxu0 0.0
    %707 = vmatprep.subr.mxu0 0.0
    %708 = vmatpush1.msra.mxu0 0.0
    %709 = vmatprep.subr.mxu0 0.0
    %710 = vmatpush1.msra.mxu0 0.0
    %711 = vmatprep.subr.mxu0 0.0
    %712 = vmatpush1.msra.mxu0 0.0
    %713 = vmatprep.subr.mxu0 0.0
    %714 = vmatpush1.msra.mxu0 0.0
    %715 = vmatprep.subr.mxu0 0.0
    %716 = vmatpush1.msra.mxu0 0.0
    %717 = vmatprep.subr.mxu0 0.0
    %718 = vmatpush1.msra.mxu0 0.0
    %719 = vmatprep.subr.mxu0 0.0
    %720 = vmatpush1.msra.mxu0 0.0
    %721 = vmatprep.subr.mxu0 0.0
    %722 = vmatpush1.msra.mxu0 0.0
    %723 = vmatprep.subr.mxu0 0.0
    %724 = vmatpush1.msra.mxu0 0.0
    %725 = vmatprep.subr.mxu0 0.0
    %726 = vmatpush1.msra.mxu0 0.0
    %727 = vmatprep.subr.mxu0 0.0
    %728 = vmatpush1.msra.mxu0 0.0
    %729 = vmatprep.subr.mxu0 0.0
    %730 = vmatpush1.msra.mxu0 0.0
    %731 = vmatprep.subr.mxu0 0.0
    %732 = vmatpush1.msra.mxu0 0.0
    %733 = vmatprep.subr.mxu0 0.0
    %734 = vmatpush1.msra.mxu0 0.0
    %735 = vmatprep.subr.mxu0 0.0
    %736 = vmatpush1.msra.mxu0 0.0
    %737 = vmatprep.subr.mxu0 0.0
    %738 = vmatpush1.msra.mxu0 0.0
    %739 = vmatprep.subr.mxu0 0.0
    %740 = vmatpush1.msra.mxu0 0.0
    %741 = vmatprep.subr.mxu0 0.0
    %742 = vmatpush1.msra.mxu0 0.0
    %743 = vmatprep.subr.mxu0 0.0
    %744 = vmatpush1.msra.mxu0 0.0
    %745 = vmatprep.subr.mxu0 0.0
    %746 = vmatpush1.msra.mxu0 0.0
    %747 = vmatprep.subr.mxu0 0.0
    %748 = vmatpush1.msra.mxu0 0.0
    %749 = vmatprep.subr.mxu0 0.0
    %750 = vmatpush1.msra.mxu0 0.0
    %751 = vmatprep.mubr.f32.mxu0 0.0
    %v752 = vand.u32 %v45, 4294901760
    %v753 = vsub.f32 %v45, %v752
    %754 = vmatmul.mubr.f32.gmra.mrb[0].mxu0 %v753
    %v755 = vpop.f32.mrb[0].mxu0
    %v756 = vadd.f32 %v679, %v755
    %v757 = vpop.f32.mrb[0].mxu0
    %v758 = vadd.f32 %v681, %v757
    %759 = vdwg.mxu0
    %v760 = vand.u32 %v521, 4294901760
    %761 = vmatprep.subr.mxu0 %v760
    %v762 = vand.u32 %v519, 4294901760
    %763 = vmatpush1.msra.mxu0 %v762
    %764 = vmatprep.subr.mxu0 0.0
    %765 = vmatpush1.msra.mxu0 0.0
    %766 = vmatprep.subr.mxu0 0.0
    %767 = vmatpush1.msra.mxu0 0.0
    %768 = vmatprep.subr.mxu0 0.0
    %769 = vmatpush1.msra.mxu0 0.0
    %770 = vmatprep.subr.mxu0 0.0
    %771 = vmatpush1.msra.mxu0 0.0
    %772 = vmatprep.subr.mxu0 0.0
    %773 = vmatpush1.msra.mxu0 0.0
    %774 = vmatprep.subr.mxu0 0.0
    %775 = vmatpush1.msra.mxu0 0.0
    %776 = vmatprep.subr.mxu0 0.0
    %777 = vmatpush1.msra.mxu0 0.0
    %778 = vmatprep.subr.mxu0 0.0
    %779 = vmatpush1.msra.mxu0 0.0
    %780 = vmatprep.subr.mxu0 0.0
    %781 = vmatpush1.msra.mxu0 0.0
    %782 = vmatprep.subr.mxu0 0.0
    %783 = vmatpush1.msra.mxu0 0.0
    %784 = vmatprep.subr.mxu0 0.0
    %785 = vmatpush1.msra.mxu0 0.0
    %786 = vmatprep.subr.mxu0 0.0
    %787 = vmatpush1.msra.mxu0 0.0
    %788 = vmatprep.subr.mxu0 0.0
    %789 = vmatpush1.msra.mxu0 0.0
    %790 = vmatprep.subr.mxu0 0.0
    %791 = vmatpush1.msra.mxu0 0.0
    %792 = vmatprep.subr.mxu0 0.0
    %793 = vmatpush1.msra.mxu0 0.0
    %794 = vmatprep.subr.mxu0 0.0
    %795 = vmatpush1.msra.mxu0 0.0
    %796 = vmatprep.subr.mxu0 0.0
    %797 = vmatpush1.msra.mxu0 0.0
    %798 = vmatprep.subr.mxu0 0.0
    %799 = vmatpush1.msra.mxu0 0.0
    %800 = vmatprep.subr.mxu0 0.0
    %801 = vmatpush1.msra.mxu0 0.0
    %802 = vmatprep.subr.mxu0 0.0
    %803 = vmatpush1.msra.mxu0 0.0
    %804 = vmatprep.subr.mxu0 0.0
    %805 = vmatpush1.msra.mxu0 0.0
    %806 = vmatprep.subr.mxu0 0.0
    %807 = vmatpush1.msra.mxu0 0.0
    %808 = vmatprep.subr.mxu0 0.0
    %809 = vmatpush1.msra.mxu0 0.0
    %810 = vmatprep.subr.mxu0 0.0
    %811 = vmatpush1.msra.mxu0 0.0
    %812 = vmatprep.subr.mxu0 0.0
    %813 = vmatpush1.msra.mxu0 0.0
    %814 = vmatprep.subr.mxu0 0.0
    %815 = vmatpush1.msra.mxu0 0.0
    %816 = vmatprep.subr.mxu0 0.0
    %817 = vmatpush1.msra.mxu0 0.0
    %818 = vmatprep.subr.mxu0 0.0
    %819 = vmatpush1.msra.mxu0 0.0
    %820 = vmatprep.subr.mxu0 0.0
    %821 = vmatpush1.msra.mxu0 0.0
    %822 = vmatprep.subr.mxu0 0.0
    %823 = vmatpush1.msra.mxu0 0.0
    %824 = vmatprep.subr.mxu0 0.0
    %825 = vmatpush1.msra.mxu0 0.0
    %826 = vmatprep.mubr.f32.mxu0 0.0
    %v827 = vand.u32 %v45, 4294901760
    %v828 = vsub.f32 %v45, %v827
    %v829 = vand.u32 %v828, 4294901760
    %830 = vmatmul.mubr.f32.gmra.mrb[0].mxu0 %v829
    %v831 = vpop.f32.mrb[0].mxu0
    %v832 = vadd.f32 %v756, %v831
    %v833 = vpop.f32.mrb[0].mxu0
    %v834 = vadd.f32 %v758, %v833
    %835 = vdwg.mxu0
    %v836 = vand.u32 %v521, 4294901760
    %v837 = vsub.f32 %v521, %v836
    %v838 = vand.u32 %v837, 4294901760
    %839 = vmatprep.subr.mxu0 %v838
    %v840 = vand.u32 %v519, 4294901760
    %v841 = vsub.f32 %v519, %v840
    %v842 = vand.u32 %v841, 4294901760
    %843 = vmatpush1.msra.mxu0 %v842
    %844 = vmatprep.subr.mxu0 0.0
    %845 = vmatpush1.msra.mxu0 0.0
    %846 = vmatprep.subr.mxu0 0.0
    %847 = vmatpush1.msra.mxu0 0.0
    %848 = vmatprep.subr.mxu0 0.0
    %849 = vmatpush1.msra.mxu0 0.0
    %850 = vmatprep.subr.mxu0 0.0
    %851 = vmatpush1.msra.mxu0 0.0
    %852 = vmatprep.subr.mxu0 0.0
    %853 = vmatpush1.msra.mxu0 0.0
    %854 = vmatprep.subr.mxu0 0.0
    %855 = vmatpush1.msra.mxu0 0.0
    %856 = vmatprep.subr.mxu0 0.0
    %857 = vmatpush1.msra.mxu0 0.0
    %858 = vmatprep.subr.mxu0 0.0
    %859 = vmatpush1.msra.mxu0 0.0
    %860 = vmatprep.subr.mxu0 0.0
    %861 = vmatpush1.msra.mxu0 0.0
    %862 = vmatprep.subr.mxu0 0.0
    %863 = vmatpush1.msra.mxu0 0.0
    %864 = vmatprep.subr.mxu0 0.0
    %865 = vmatpush1.msra.mxu0 0.0
    %866 = vmatprep.subr.mxu0 0.0
    %867 = vmatpush1.msra.mxu0 0.0
    %868 = vmatprep.subr.mxu0 0.0
    %869 = vmatpush1.msra.mxu0 0.0
    %870 = vmatprep.subr.mxu0 0.0
    %871 = vmatpush1.msra.mxu0 0.0
    %872 = vmatprep.subr.mxu0 0.0
    %873 = vmatpush1.msra.mxu0 0.0
    %874 = vmatprep.subr.mxu0 0.0
    %875 = vmatpush1.msra.mxu0 0.0
    %876 = vmatprep.subr.mxu0 0.0
    %877 = vmatpush1.msra.mxu0 0.0
    %878 = vmatprep.subr.mxu0 0.0
    %879 = vmatpush1.msra.mxu0 0.0
    %880 = vmatprep.subr.mxu0 0.0
    %881 = vmatpush1.msra.mxu0 0.0
    %882 = vmatprep.subr.mxu0 0.0
    %883 = vmatpush1.msra.mxu0 0.0
    %884 = vmatprep.subr.mxu0 0.0
    %885 = vmatpush1.msra.mxu0 0.0
    %886 = vmatprep.subr.mxu0 0.0
    %887 = vmatpush1.msra.mxu0 0.0
    %888 = vmatprep.subr.mxu0 0.0
    %889 = vmatpush1.msra.mxu0 0.0
    %890 = vmatprep.subr.mxu0 0.0
    %891 = vmatpush1.msra.mxu0 0.0
    %892 = vmatprep.subr.mxu0 0.0
    %893 = vmatpush1.msra.mxu0 0.0
    %894 = vmatprep.subr.mxu0 0.0
    %895 = vmatpush1.msra.mxu0 0.0
    %896 = vmatprep.subr.mxu0 0.0
    %897 = vmatpush1.msra.mxu0 0.0
    %898 = vmatprep.subr.mxu0 0.0
    %899 = vmatpush1.msra.mxu0 0.0
    %900 = vmatprep.subr.mxu0 0.0
    %901 = vmatpush1.msra.mxu0 0.0
    %902 = vmatprep.subr.mxu0 0.0
    %903 = vmatpush1.msra.mxu0 0.0
    %904 = vmatprep.subr.mxu0 0.0
    %905 = vmatpush1.msra.mxu0 0.0
    %906 = vmatprep.mubr.f32.mxu0 0.0
    %v907 = vand.u32 %v45, 4294901760
    %908 = vmatmul.mubr.f32.gmra.mrb[0].mxu0 %v907
    %v909 = vpop.f32.mrb[0].mxu0
    %v910 = vadd.f32 %v832, %v909
    %v911 = vpop.f32.mrb[0].mxu0
    %v912 = vadd.f32 %v834, %v911
    %913 = vdwg.mxu0
    %v914 = vand.u32 %v521, 4294901760
    %915 = vmatprep.subr.mxu0 %v914
    %v916 = vand.u32 %v519, 4294901760
    %917 = vmatpush1.msra.mxu0 %v916
    %918 = vmatprep.subr.mxu0 0.0
    %919 = vmatpush1.msra.mxu0 0.0
    %920 = vmatprep.subr.mxu0 0.0
    %921 = vmatpush1.msra.mxu0 0.0
    %922 = vmatprep.subr.mxu0 0.0
    %923 = vmatpush1.msra.mxu0 0.0
    %924 = vmatprep.subr.mxu0 0.0
    %925 = vmatpush1.msra.mxu0 0.0
    %926 = vmatprep.subr.mxu0 0.0
    %927 = vmatpush1.msra.mxu0 0.0
    %928 = vmatprep.subr.mxu0 0.0
    %929 = vmatpush1.msra.mxu0 0.0
    %930 = vmatprep.subr.mxu0 0.0
    %931 = vmatpush1.msra.mxu0 0.0
    %932 = vmatprep.subr.mxu0 0.0
    %933 = vmatpush1.msra.mxu0 0.0
    %934 = vmatprep.subr.mxu0 0.0
    %935 = vmatpush1.msra.mxu0 0.0
    %936 = vmatprep.subr.mxu0 0.0
    %937 = vmatpush1.msra.mxu0 0.0
    %938 = vmatprep.subr.mxu0 0.0
    %939 = vmatpush1.msra.mxu0 0.0
    %940 = vmatprep.subr.mxu0 0.0
    %941 = vmatpush1.msra.mxu0 0.0
    %942 = vmatprep.subr.mxu0 0.0
    %943 = vmatpush1.msra.mxu0 0.0
    %944 = vmatprep.subr.mxu0 0.0
    %945 = vmatpush1.msra.mxu0 0.0
    %946 = vmatprep.subr.mxu0 0.0
    %947 = vmatpush1.msra.mxu0 0.0
    %948 = vmatprep.subr.mxu0 0.0
    %949 = vmatpush1.msra.mxu0 0.0
    %950 = vmatprep.subr.mxu0 0.0
    %951 = vmatpush1.msra.mxu0 0.0
    %952 = vmatprep.subr.mxu0 0.0
    %953 = vmatpush1.msra.mxu0 0.0
    %954 = vmatprep.subr.mxu0 0.0
    %955 = vmatpush1.msra.mxu0 0.0
    %956 = vmatprep.subr.mxu0 0.0
    %957 = vmatpush1.msra.mxu0 0.0
    %958 = vmatprep.subr.mxu0 0.0
    %959 = vmatpush1.msra.mxu0 0.0
    %960 = vmatprep.subr.mxu0 0.0
    %961 = vmatpush1.msra.mxu0 0.0
    %962 = vmatprep.subr.mxu0 0.0
    %963 = vmatpush1.msra.mxu0 0.0
    %964 = vmatprep.subr.mxu0 0.0
    %965 = vmatpush1.msra.mxu0 0.0
    %966 = vmatprep.subr.mxu0 0.0
    %967 = vmatpush1.msra.mxu0 0.0
    %968 = vmatprep.subr.mxu0 0.0
    %969 = vmatpush1.msra.mxu0 0.0
    %970 = vmatprep.subr.mxu0 0.0
    %971 = vmatpush1.msra.mxu0 0.0
    %972 = vmatprep.subr.mxu0 0.0
    %973 = vmatpush1.msra.mxu0 0.0
    %974 = vmatprep.subr.mxu0 0.0
    %975 = vmatpush1.msra.mxu0 0.0
    %976 = vmatprep.subr.mxu0 0.0
    %977 = vmatpush1.msra.mxu0 0.0
    %978 = vmatprep.subr.mxu0 0.0
    %979 = vmatpush1.msra.mxu0 0.0
    %980 = vmatprep.mubr.f32.mxu0 0.0
    %v981 = vand.u32 %v45, 4294901760
    %982 = vmatmul.mubr.f32.gmra.mrb[0].mxu0 %v981
    %v983 = vpop.f32.mrb[0].mxu0
    %v984 = vadd.f32 %v910, %v983
    %v985 = vpop.f32.mrb[0].mxu0
    %v986 = vadd.f32 %v912, %v985
    %987 = vdwg.mxu0
    %vm988 = vcmask 1042432
    %v989 = vsel %vm988, %v513, -inf
    %v990 = vsel %vm988, %v515, -inf
    %v991 = vmax.f32 %v989, %v990
    %992 = vmax.xlane.f32.xlu0 %v991
    %v993 = vpop.xlane.xlu0 %992
    %v994 = vsel %vm988, %v984, -inf
    %v995 = vsel %vm988, %v986, -inf
    %v996 = vmax.f32 %v994, %v995
    %997 = vmax.xlane.f32.xlu0 %v996
    %v998 = vpop.xlane.xlu0 %997
    %v999 = vsub.f32 %v513, %v993
    %v1000 = vsub.f32 %v515, %v993
    %v1001 = vsub.f32 %v984, %v998
    %v1002 = vsub.f32 %v986, %v998
    %v1003 = vmul.f32 %v999, 1.442695
    %v1004 = vpow.pop %v1003
    %v1005 = vmul.f32 %v1000, 1.442695
    %v1006 = vpow.pop %v1005
    %v1007 = vmul.f32 %v1001, 1.442695
    %v1008 = vpow.pop %v1007
    %v1009 = vmul.f32 %v1002, 1.442695
    %v1010 = vpow.pop %v1009
    %v1011 = vsel %vm988, %v1004, 0.0
    %v1012 = vsel %vm988, %v1006, 0.0
    %v1013 = vadd.f32 %v1011, %v1012
    %1014 = vadd.xlane.f32.xlu0 %v1013
    %v1015 = vpop.xlane.xlu0 %1014
    %v1016 = vsel %vm988, %v1008, 0.0
    %v1017 = vsel %vm988, %v1010, 0.0
    %v1018 = vadd.f32 %v1016, %v1017
    %1019 = vadd.xlane.f32.xlu0 %v1018
    %v1020 = vpop.xlane.xlu0 %1019
    %v1021 = vlog2.pop %v1015
    %v1022 = vmul.f32 %v1021, 0.6931472
    %v1023 = vlog2.pop %v1020
    %v1024 = vmul.f32 %v1023, 0.6931472
    %v1025 = vadd.f32 %v993, %v1022
    %v1026 = vadd.f32 %v998, %v1024
    %v1029 = vlaneseq
    %v1030 = vand.u32 %v1029, 127
    %v1031 = vlaneseq
    %v1032 = vshrl.u32 %v1031, 7
    %v1033 = vsub.s32 %v1030, %v1032
    %v1034 = vrot.slane %v1025, %v1033
    %v1035 = vlaneseq
    %v1036 = vshrl.u32 %v1035, 7
    %v1037 = vsub.s32 %v1030, %v1036
    %v1038 = vrot.slane %v1026, %v1037
    %vm1039 = vcmask 1041409
    %v1040 = vsel %vm1039, %v1038, %v1034
    %vm1042 = vcmask 17408
    %1043 = vst.msk [vmem:[#allocation7] sm:$0x3] %vm1042, %v1040
    // Predicated region
    $region18: #{tpu_custom_call.1} parent=1 // pred_check
      _
    $region19: #{tpu_custom_call.1} parent=1 // pred_check_branch
      %1045 = sbr.rel (0) target = $region21
    $region20: #{tpu_custom_call.1} parent=1 // pred_region
      %s1047 = ssub.s32 32, 32
      %1048 = vsyncadd [#allocation4], %s1047
      %s1050 = sshll.u32 [#allocation7], 4
      %s1051 = int_to_ptr.vmem [resolvable:$true] %s1050
      %1053 = dma.vmem_to_hbm [thread:$0]  %s1051, 32, %s2, [#allocation4]
    $region21: #{tpu_custom_call.1} parent=1 // pred_fallthru
      _
    // Predicated region
    $region22: #{tpu_custom_call.1} parent=1 // pred_check
      _
    $region23: #{tpu_custom_call.1} parent=1 // pred_check_branch
      %1055 = sbr.rel (0) target = $region25
    $region24: #{tpu_custom_call.1} parent=1 // pred_region
      %1056 = dma.done [#allocation4], 32
    $region25: #{tpu_custom_call.1} parent=1 // pred_fallthru
      _
    %1057 = vsyncpa [#allocation3], 1
    %1058 = vsyncpa [#allocation6], 1
    %1059 = vsyncpa [#allocation4], 1

</llo_original>
